<compile_context>
chip_gen: v7x
topology: tpu7x:2x2x1
jax: 0.10.0
libtpu: 0.0.40
codegen_flags: <defaults>
</compile_context>

<pallas_src>
import functools

import jax
import jax.numpy as jnp
from jax import lax
from jax.experimental import pallas as pl
from jax.experimental.pallas import tpu as pltpu

_LANE = 128                      # vreg lane width
_MAX_TR = 2048                   # rows per block -> 2048*128*4 B = 1 MiB per f32 stream
_VMEM_LIMIT = 32 * 1024 * 1024   # explicit scoped-VMEM limit (v5e default is only 16 MiB)


def _round_up(x, m):
    return ((x + m - 1) // m) * m


def _sublane_gran(dtype):
    """Native sublane granularity for a dtype: 8 (4B), 16 (2B), 32 (1B)."""
    return max(8, 32 // jnp.dtype(dtype).itemsize)


def _int_pow(p, k):
    """p ** k for small static non-negative integer k via pure VPU multiplies."""
    if k == 0:
        return jnp.ones_like(p)
    out = p
    for _ in range(k - 1):
        out = out * p
    return out


def _focal_elementwise(pred, labels, alpha):
    """Focal-loss math on one VMEM tile (f32 accumulation, native-dtype compare)."""
    p = jnp.clip(pred.astype(jnp.float32), 0.001, 1.0 - 0.001)
    is_pos = labels == 1                       # native dtype compare, no float mask math
    a = float(alpha)
    if a == round(a) and 0.0 <= a <= 4.0:
        # Small-integer alpha fast path: one log per element, pow via multiplies.
        factor = jnp.where(is_pos, jnp.float32(1.0), _int_pow(p, int(a)))
        log_arg = jnp.where(is_pos, p, 1.0 - p)
        return -factor * jnp.log(log_arg)
    log_p = jnp.log(p)
    log_1mp = jnp.log(1.0 - p)
    p_alpha = jnp.exp(jnp.float32(a) * log_p)
    return jnp.where(is_pos, -log_p, -p_alpha * log_1mp)


def _tree_sum_rows(loss, tr):
    """Reduce (tr, 128) -> (8, 128) via a log-depth tree of aligned vreg adds (tr % 8 == 0)."""
    chunks = [loss[r * 8:(r + 1) * 8, :] for r in range(tr // 8)]
    while len(chunks) > 1:
        nxt = [a + b for a, b in zip(chunks[0::2], chunks[1::2])]
        if len(chunks) % 2:
            nxt.append(chunks[-1])
        chunks = nxt
    return chunks[0]


def _focal_none_kernel(pred_ref, lab_ref, out_ref, *, alpha):
    loss = _focal_elementwise(pred_ref[...], lab_ref[...], alpha)
    out_ref[...] = loss.astype(out_ref.dtype)


def _focal_partial_kernel(pred_ref, lab_ref, out_ref, *, alpha, tr, n_last, has_tail):
    loss = _focal_elementwise(pred_ref[...], lab_ref[...], alpha)
    if has_tail:
        is_last = pl.program_id(0) == pl.num_programs(0) - 1

        @pl.when(is_last)
        def _():
            # Block-local index bound (<= tr*128, int32-safe even for huge n).
            row = lax.broadcasted_iota(jnp.int32, (tr, _LANE), 0)
            col = lax.broadcasted_iota(jnp.int32, (tr, _LANE), 1)
            local = row * _LANE + col
            out_ref[0] = _tree_sum_rows(jnp.where(local < n_last, loss, 0.0), tr)

        @pl.when(jnp.logical_not(is_last))
        def _():
            out_ref[0] = _tree_sum_rows(loss, tr)
    else:
        out_ref[0] = _tree_sum_rows(loss, tr)


def binary_focal_loss(pred, labels, alpha, reduction="mean"):
    """JAX/Pallas equivalent of BinaryFocalLoss.forward (alpha static)."""
    valid_reductions = ("mean", "sum", "none")
    if reduction not in valid_reductions:
        raise ValueError(
            f'Invalid reduction choice: "{reduction}". '
            f"Valid choices: {list(valid_reductions)}."
        )

    orig_shape = pred.shape
    n = int(pred.size)

    # Keep HBM streams narrow: no wrapper-side f32 upcasts; cast on-chip.
    if not jnp.issubdtype(pred.dtype, jnp.floating):
        pred = pred.astype(jnp.float32)
    if labels.dtype == jnp.bool_:
        # Only bool callers pay a 1 B/elem conversion pass; prefer int8/float labels.
        labels = labels.astype(jnp.int8)
    out_dtype = pred.dtype

    gran = max(_sublane_gran(pred.dtype), _sublane_gran(labels.dtype))

    # Slab geometry (all static Python ints); partial last grid block is allowed.
    rows = pl.cdiv(n, _LANE)
    if rows <= gran:                       # tiny input: a single full-array block
        rows = _round_up(rows, 8)
        tr = rows
    else:                                  # aim for >= 2 blocks (v7x has 2 TensorCores)
        tr = max(gran, min(_MAX_TR, _round_up(pl.cdiv(rows, 2), gran)))
    num_blocks = pl.cdiv(rows, tr)
    padded = rows * _LANE

    pred_flat = pred.reshape(-1)
    lab_flat = labels.reshape(-1)
    if padded != n:                        # pad only when n is not a lane multiple / tiny
        pred_flat = jnp.pad(pred_flat, (0, padded - n))
        lab_flat = jnp.pad(lab_flat, (0, padded - n))
    pred2d = pred_flat.reshape(rows, _LANE)
    lab2d = lab_flat.reshape(rows, _LANE)

    in_tile = pl.BlockSpec((tr, _LANE), lambda i: (i, 0))
    cparams = pltpu.CompilerParams(
        dimension_semantics=("parallel",),
        vmem_limit_bytes=_VMEM_LIMIT,
    )

    if reduction == "none":
        out = pl.pallas_call(
            functools.partial(_focal_none_kernel, alpha=alpha),
            out_shape=jax.ShapeDtypeStruct((rows, _LANE), out_dtype),
            grid_spec=pltpu.PrefetchScalarGridSpec(
                num_scalar_prefetch=0,
                grid=(num_blocks,),
                in_specs=[in_tile, in_tile],
                out_specs=pl.BlockSpec((tr, _LANE), lambda i: (i, 0)),
            ),
            compiler_params=cparams,
        )(pred2d, lab2d)
        if padded == n:
            return out.reshape(orig_shape)      # free reshape, no extra HBM pass
        return out.reshape(-1)[:n].reshape(orig_shape)

    # sum / mean: per-block (8, 128) vector partials, fully parallel grid.
    has_tail = num_blocks * tr * _LANE > n
    n_last = n - (num_blocks - 1) * tr * _LANE   # static, <= tr*128 so int32-safe

    partials = pl.pallas_call(
        functools.partial(_focal_partial_kernel, alpha=alpha, tr=tr,
                          n_last=n_last, has_tail=has_tail),
        out_shape=jax.ShapeDtypeStruct((num_blocks, 8, _LANE), jnp.float32),
        grid_spec=pltpu.PrefetchScalarGridSpec(
            num_scalar_prefetch=0,
            grid=(num_blocks,),
            in_specs=[in_tile, in_tile],
            out_specs=pl.BlockSpec((1, 8, _LANE), lambda i: (i, 0, 0)),
        ),
        compiler_params=cparams,
    )(pred2d, lab2d)

    total = jnp.sum(partials)
    if reduction == "sum":
        return total.astype(out_dtype)
    return (total / jnp.float32(n)).astype(out_dtype)


def _reference(pred, labels, alpha, reduction):
    p = jnp.clip(pred.astype(jnp.float32), 0.001, 1.0 - 0.001)
    mask = (labels.astype(jnp.float32) == 1.0).astype(jnp.float32)
    loss = -mask * jnp.log(p) - (1 - mask) * jnp.power(p, alpha) * jnp.log(1 - p)
    if reduction == "none":
        return loss
    if reduction == "sum":
        return jnp.sum(loss)
    return jnp.mean(loss)


if __name__ == "__main__":
    key = jax.random.PRNGKey(0)
    k1, k2 = jax.random.split(key)

    # Small NCHW-like shape consistent with a dense per-pixel binary prediction.
    shape = (2, 4, 16, 16)
    pred = jax.random.uniform(k1, shape, jnp.float32)              # probs in [0, 1]
    labels = (jax.random.uniform(k2, shape, jnp.float32) > 0.5).astype(jnp.float32)
    alpha = 2.0

    ok = True
    for reduction in ("mean", "sum", "none"):
        out = jax.block_until_ready(binary_focal_loss(pred, labels, alpha, reduction))
        ref = _reference(pred, labels, alpha, reduction)
        if not jnp.allclose(out, ref, rtol=1e-5, atol=1e-5):
            ok = False

    if ok:
        print("KERNEL_OK")
</pallas_src>

<mosaic_0001>
module attributes {stable_mosaic.version = 11 : i64} {
  func.func @_focal_partial_kernel(%arg0: i32, %arg1: memref<8x128xf32, #tpu.memory_space<vmem>>, %arg2: memref<8x128xf32, #tpu.memory_space<vmem>>, %arg3: memref<1x8x128xf32, #tpu.memory_space<vmem>>) attributes {dimension_semantics = [#tpu.dimension_semantics<parallel>], iteration_bounds = array<i64: 2>, scalar_prefetch = 0 : i64, scratch_operands = 0 : i64, tpu.core_type = #tpu.core_type<tc>, window_params = [{transform_indices = @transform_0, window_bounds = array<i64: 8, 128>}, {transform_indices = @transform_1, window_bounds = array<i64: 8, 128>}, {transform_indices = @transform_2, window_bounds = array<i64: 1, 8, 128>}]} {
    %c0 = arith.constant 0 : index
    %c0_0 = arith.constant 0 : index
    %0 = vector.load %arg1[%c0, %c0_0] : memref<8x128xf32, #tpu.memory_space<vmem>>, vector<8x128xf32>
    %c0_1 = arith.constant 0 : index
    %c0_2 = arith.constant 0 : index
    %1 = vector.load %arg2[%c0_1, %c0_2] : memref<8x128xf32, #tpu.memory_space<vmem>>, vector<8x128xf32>
    %cst = arith.constant 1.000000e-03 : f32
    %cst_3 = arith.constant 9.990000e-01 : f32
    %2 = vector.broadcast %cst : f32 to vector<8x128xf32>
    %3 = arith.maximumf %2, %0 : vector<8x128xf32>
    %4 = vector.broadcast %cst_3 : f32 to vector<8x128xf32>
    %5 = arith.minimumf %4, %3 : vector<8x128xf32>
    %cst_4 = arith.constant 1.000000e+00 : f32
    %6 = vector.broadcast %cst_4 : f32 to vector<8x128xf32>
    %7 = arith.cmpf oeq, %1, %6 : vector<8x128xf32>
    %8 = arith.mulf %5, %5 : vector<8x128xf32>
    %cst_5 = arith.constant 1.000000e+00 : f32
    %9 = vector.broadcast %cst_5 : f32 to vector<8x128xf32>
    %10 = arith.select %7, %9, %8 : vector<8x128xi1>, vector<8x128xf32>
    %cst_6 = arith.constant 1.000000e+00 : f32
    %11 = vector.broadcast %cst_6 : f32 to vector<8x128xf32>
    %12 = arith.subf %11, %5 : vector<8x128xf32>
    %13 = arith.select %7, %5, %12 : vector<8x128xi1>, vector<8x128xf32>
    %cst_7 = arith.constant 0.000000e+00 : f32
    %14 = vector.broadcast %cst_7 : f32 to vector<8x128xf32>
    %15 = arith.subf %14, %10 : vector<8x128xf32>
    %16 = math.log %13 : vector<8x128xf32>
    %17 = arith.mulf %15, %16 : vector<8x128xf32>
    %c0_8 = arith.constant 0 : index
    %c0_9 = arith.constant 0 : index
    %c0_10 = arith.constant 0 : index
    %18 = vector.load %arg3[%c0_8, %c0_9, %c0_10] : memref<1x8x128xf32, #tpu.memory_space<vmem>>, vector<1x8x128xf32>
    %19 = vector.shape_cast %18 : vector<1x8x128xf32> to vector<8x128xf32>
    %20 = vector.shape_cast %17 : vector<8x128xf32> to vector<1x8x128xf32>
    tpu.vector_store %arg3[%c0_8, %c0_9, %c0_10], %20 {strides = array<i32>} : memref<1x8x128xf32, #tpu.memory_space<vmem>>, vector<1x8x128xf32>,
    return
  }
  func.func @transform_0(%arg0: i32) -> (i32, i32) {
    %c0_i32 = arith.constant 0 : i32
    %c0_i32_0 = arith.constant 0 : i32
    return %arg0, %c0_i32 : i32, i32
  }
  func.func @transform_1(%arg0: i32) -> (i32, i32) {
    %c0_i32 = arith.constant 0 : i32
    %c0_i32_0 = arith.constant 0 : i32
    return %arg0, %c0_i32 : i32, i32
  }
  func.func @transform_2(%arg0: i32) -> (i32, i32, i32) {
    %c0_i32 = arith.constant 0 : i32
    %c0_i32_0 = arith.constant 0 : i32
    %c0_i32_1 = arith.constant 0 : i32
    return %arg0, %c0_i32, %c0_i32_0 : i32, i32, i32
  }
}

</mosaic_0001>

<llo_original>
// kernel: tpu_custom_call.1
$region0: #{tpu_custom_call.1}
  #allocation0 [shape = 'u32[]', space=smem, size = 0x4, offset = 0x4, fixed_abs, tag = 'smem constant byte address 0x4 - core index']
  #allocation1 [shape = 'u32[144,128]{1,0:T(1,128)}', space=vmem, size = 0x12000, scoped, tag = 'internal scratch']
  %s0 = inlined_call_operand.hbm [shape: f32[16,128], index: 0, kind: input, shape index: {}]
  %s1 = inlined_call_operand.hbm [shape: f32[16,128], index: 1, kind: input, shape index: {}]
  %s2 = inlined_call_operand.hbm [shape: f32[2,8,128], index: 2, kind: output, shape index: {}]
  %s3 = sld [smem:[#allocation0]]
  $region49: #{tpu_custom_call.1} parent=0
    _
  %s5 = ssub.s32 1, %s3
  %s6 = scalar_select 0, %s5, %s3
  $region1: #{tpu_custom_call.1} parent=0
    #allocation2 [shape = 'u8[8192]{0}', space=vmem, size = 0x2000, scoped, tag = 'input window, operand 0']
    #allocation3 [shape = 's32[2]{0}', space=sflag, size = 0x8, scoped, tag = 'scoped memory for tpu_custom_call.1']
    #allocation4 [shape = 's32[2]{0}', space=sflag, size = 0x8, scoped, tag = 'scoped memory for tpu_custom_call.1']
    #allocation5 [shape = 'u8[8192]{0}', space=vmem, size = 0x2000, scoped, tag = 'input window, operand 1']
    #allocation6 [shape = 's32[2]{0}', space=sflag, size = 0x8, scoped, tag = 'scoped memory for tpu_custom_call.1']
    #allocation7 [shape = 'u8[8192]{0}', space=vmem, size = 0x2000, scoped, tag = 'output window, operand 0']
    %7 = vsyncpa [#allocation3], 0
    %s8 = scalar_lea.sflag [#allocation3], 1
    %9 = vsyncpa %s8, 0
    %10 = vsyncpa [#allocation6], 0
    %s11 = scalar_lea.sflag [#allocation6], 1
    %12 = vsyncpa %s11, 0
    %13 = vsyncpa [#allocation4], 0
    %s14 = scalar_lea.sflag [#allocation4], 1
    %15 = vsyncpa %s14, 0
    loop: start=0, step=1, limit=4
    $region2: #{tpu_custom_call.1} parent=1 // loop_pre_header
      _
    $region3: #{tpu_custom_call.1} parent=1 // loop_header
      %s17 = sphi 0, %s21
      %p18 = scmp.ge.s32.totalorder %s17, 4
      %s27 = sphi 0, %s29
      %s30 = sphi 0, %s27
      %s31 = sphi 0, %s30
      %s47 = sphi 0, %s31
      %s53 = sphi 0, %s55
      %s56 = sphi 0, %s53
      %s57 = sphi 0, %s56
      %s73 = sphi 0, %s57
      %s79 = sphi 0, %s81
      %s82 = sphi 0, %s79
      %s83 = sphi 0, %s82
      %s99 = sphi 0, %s83
    $region4: #{tpu_custom_call.1} parent=1 // loop_header_branch
      %20 = sbr.rel (%p18) target = $region8
    $region5: #{tpu_custom_call.1} parent=1 // loop_body
      %s22 = ssub.s32 %s17, 1
      %s23 = ssub.s32 %s17, 2
      %s24 = sadd.s32 %s17, 1
      %s25 = ssub.s32 %s17, %s24
      %p26 = scmp.eq.s32.totalorder %s25, 0
      %s28 = sadd.s32 %s27, 1
      %s29 = scalar_select %p26, %s27, %s28
      %p32 = pneg %p26
      %p33 = scmp.eq.s32.totalorder %s17, 1
      %p34 = por %p32, %p33
      %p35 = scmp.ne.s32.totalorder %s27, %s30
      %p36 = scmp.eq.s32.totalorder %s17, 0
      %p37 = por %p35, %p36
      %p38 = scmp.ne.s32.totalorder %s27, %s30
      %p39 = scmp.eq.s32.totalorder %s22, 1
      %p40 = por %p38, %p39
      %p41 = scmp.ne.s32.totalorder %s30, %s31
      %p42 = scmp.eq.s32.totalorder %s22, 0
      %p43 = por %p41, %p42
      %p44 = scmp.ne.s32.totalorder %s30, %s31
      %p45 = scmp.eq.s32.totalorder %s23, 1
      %p46 = por %p44, %p45
      %p48 = scmp.ne.s32.totalorder %s31, %s47
      %p49 = scmp.eq.s32.totalorder %s23, 0
      %p50 = por %p48, %p49
      %s51 = ssub.s32 %s17, %s24
      %p52 = scmp.eq.s32.totalorder %s51, 0
      %s54 = sadd.s32 %s53, 1
      %s55 = scalar_select %p52, %s53, %s54
      %p58 = pneg %p52
      %p59 = scmp.eq.s32.totalorder %s17, 1
      %p60 = por %p58, %p59
      %p61 = scmp.ne.s32.totalorder %s53, %s56
      %p62 = scmp.eq.s32.totalorder %s17, 0
      %p63 = por %p61, %p62
      %p64 = scmp.ne.s32.totalorder %s53, %s56
      %p65 = scmp.eq.s32.totalorder %s22, 1
      %p66 = por %p64, %p65
      %p67 = scmp.ne.s32.totalorder %s56, %s57
      %p68 = scmp.eq.s32.totalorder %s22, 0
      %p69 = por %p67, %p68
      %p70 = scmp.ne.s32.totalorder %s56, %s57
      %p71 = scmp.eq.s32.totalorder %s23, 1
      %p72 = por %p70, %p71
      %p74 = scmp.ne.s32.totalorder %s57, %s73
      %p75 = scmp.eq.s32.totalorder %s23, 0
      %p76 = por %p74, %p75
      %s77 = ssub.s32 %s17, %s24
      %p78 = scmp.eq.s32.totalorder %s77, 0
      %s80 = sadd.s32 %s79, 1
      %s81 = scalar_select %p78, %s79, %s80
      %p84 = pneg %p78
      %p85 = scmp.eq.s32.totalorder %s17, 1
      %p86 = por %p84, %p85
      %p87 = scmp.ne.s32.totalorder %s79, %s82
      %p88 = scmp.eq.s32.totalorder %s17, 0
      %p89 = por %p87, %p88
      %p90 = scmp.ne.s32.totalorder %s79, %s82
      %p91 = scmp.eq.s32.totalorder %s22, 1
      %p92 = por %p90, %p91
      %p93 = scmp.ne.s32.totalorder %s82, %s83
      %p94 = scmp.eq.s32.totalorder %s22, 0
      %p95 = por %p93, %p94
      %p96 = scmp.ne.s32.totalorder %s82, %s83
      %p97 = scmp.eq.s32.totalorder %s23, 1
      %p98 = por %p96, %p97
      %p100 = scmp.ne.s32.totalorder %s83, %s99
      %p101 = scmp.eq.s32.totalorder %s23, 0
      %p102 = por %p100, %p101
      %p103 = scmp.le.s32.totalorder 1, %s17
      %p104 = scmp.lt.s32.totalorder %s17, 3
      %p105 = pnand %p103, %p104
      %p106 = pneg %p105
      // Predicated region
      $region9: #{tpu_custom_call.1} parent=5 // pred_check
        _
      $region10: #{tpu_custom_call.1} parent=5 // pred_check_branch
        %108 = sbr.rel (%p105) target = $region12
      $region11: #{tpu_custom_call.1} parent=5 // pred_region
        %s109 = ssub.s32 %s17, 1
      $region12: #{tpu_custom_call.1} parent=5 // pred_fallthru
        _
      %p110 = scmp.lt.s32.totalorder %s17, 2
      // Predicated region
      $region13: #{tpu_custom_call.1} parent=5 // pred_check
        %p111 = pneg %p110
      $region14: #{tpu_custom_call.1} parent=5 // pred_check_branch
        %113 = sbr.rel (%p111) target = $region16
      $region15: #{tpu_custom_call.1} parent=5 // pred_region
        // Predicated region
        $region17: #{tpu_custom_call.1} parent=15 // pred_check
          %p114 = pneg %p37
        $region18: #{tpu_custom_call.1} parent=15 // pred_check_branch
          %116 = sbr.rel (%p114) target = $region20
        $region19: #{tpu_custom_call.1} parent=15 // pred_region
          %s117 = sand.u32 %s27, 1
          %s118 = scalar_lea.sflag [#allocation3], %s117
          %s119 = sand.u32 %s27, 1
          %s120 = smul.addr %s119, 8
          %s121 = scalar_lea.vmem [#allocation2], %s120
          %s123 = ssub.s32 128, 128
          %124 = vsyncadd %s118, %s123
          %s125 = smul.addr %s17, 128
          %s126 = scalar_lea.hbm %s0, %s125
          %s128 = sshll.u32 %s121, 4
          %s129 = int_to_ptr.vmem [resolvable:$true] %s128
          %131 = dma.hbm_to_vmem [thread:$0]  %s126, 128, %s129, %s118
        $region20: #{tpu_custom_call.1} parent=15 // pred_fallthru
          _
        // Predicated region
        $region21: #{tpu_custom_call.1} parent=15 // pred_check
          %p132 = pneg %p63
        $region22: #{tpu_custom_call.1} parent=15 // pred_check_branch
          %134 = sbr.rel (%p132) target = $region24
        $region23: #{tpu_custom_call.1} parent=15 // pred_region
          %s135 = sand.u32 %s53, 1
          %s136 = scalar_lea.sflag [#allocation6], %s135
          %s137 = sand.u32 %s53, 1
          %s138 = smul.addr %s137, 8
          %s139 = scalar_lea.vmem [#allocation5], %s138
          %s141 = ssub.s32 128, 128
          %142 = vsyncadd %s136, %s141
          %s143 = smul.addr %s17, 128
          %s144 = scalar_lea.hbm %s1, %s143
          %s146 = sshll.u32 %s139, 4
          %s147 = int_to_ptr.vmem [resolvable:$true] %s146
          %149 = dma.hbm_to_vmem [thread:$0]  %s144, 128, %s147, %s136
        $region24: #{tpu_custom_call.1} parent=15 // pred_fallthru
          _
      $region16: #{tpu_custom_call.1} parent=5 // pred_fallthru
        _
      %p150 = scmp.le.s32.totalorder 1, %s17
      %p151 = scmp.lt.s32.totalorder %s17, 3
      %p152 = pnand %p150, %p151
      %p153 = pneg %p152
      // Predicated region
      $region25: #{tpu_custom_call.1} parent=5 // pred_check
        _
      $region26: #{tpu_custom_call.1} parent=5 // pred_check_branch
        %155 = sbr.rel (%p152) target = $region28
      $region27: #{tpu_custom_call.1} parent=5 // pred_region
        %s156 = ssub.s32 %s17, 1
        %s157 = sand.u32 %s30, 1
        %s158 = scalar_lea.sflag [#allocation3], %s157
        %s159 = sand.u32 %s30, 1
        %s160 = smul.addr %s159, 8
        %s161 = scalar_lea.vmem [#allocation2], %s160
        // Predicated region
        $region29: #{tpu_custom_call.1} parent=27 // pred_check
          %p162 = pneg %p43
        $region30: #{tpu_custom_call.1} parent=27 // pred_check_branch
          %164 = sbr.rel (%p162) target = $region32
        $region31: #{tpu_custom_call.1} parent=27 // pred_region
          %165 = dma.done %s158, 128
        $region32: #{tpu_custom_call.1} parent=27 // pred_fallthru
          _
        %s166 = sand.u32 %s56, 1
        %s167 = scalar_lea.sflag [#allocation6], %s166
        %s168 = sand.u32 %s56, 1
        %s169 = smul.addr %s168, 8
        %s170 = scalar_lea.vmem [#allocation5], %s169
        // Predicated region
        $region33: #{tpu_custom_call.1} parent=27 // pred_check
          %p171 = pneg %p69
        $region34: #{tpu_custom_call.1} parent=27 // pred_check_branch
          %173 = sbr.rel (%p171) target = $region36
        $region35: #{tpu_custom_call.1} parent=27 // pred_region
          %174 = dma.done %s167, 128
        $region36: #{tpu_custom_call.1} parent=27 // pred_fallthru
          _
        %s175 = sand.u32 %s30, 1
        %s176 = scalar_lea.sflag [#allocation3], %s175
        %s177 = sand.u32 %s30, 1
        %s178 = smul.addr %s177, 8
        %s179 = scalar_lea.vmem [#allocation2], %s178
        %p180 = pneg %p43
        %p181 = pneg %p40
        %s182 = sand.u32 %s56, 1
        %s183 = scalar_lea.sflag [#allocation6], %s182
        %s184 = sand.u32 %s56, 1
        %s185 = smul.addr %s184, 8
        %s186 = scalar_lea.vmem [#allocation5], %s185
        %p187 = pneg %p69
        %p188 = pneg %p66
        %p189 = pneg %p95
        %p190 = pneg %p92
        %s191 = sand.u32 %s82, 1
        %s192 = scalar_lea.sflag [#allocation4], %s191
        %s193 = sand.u32 %s82, 1
        %s194 = smul.addr %s193, 8
        %s195 = scalar_lea.vmem [#allocation7], %s194
        %v196 = vld [vmem:[%s161] sm:$0xff]
        %v197 = vld [vmem:[%s170] sm:$0xff]
        %v198 = vmax.f32 %v196, 0.001
        %v199 = vmin.f32 %v198, 0.999
        %vm200 = vcmp.eq.f32.partialorder %v197, 1.0
        %v201 = vmul.f32 %v199, %v199
        %v202 = vsel %vm200, 1.0, %v201
        %v203 = vsub.f32 1.0, %v199
        %v204 = vsel %vm200, %v199, %v203
        %v205 = vsub.f32 0.0, %v202
        %v206 = vlog2.pop %v204
        %v207 = vmul.f32 %v206, 0.6931472
        %v208 = vmul.f32 %v205, %v207
        %209 = vst [vmem:[%s195] sm:$0xff] %v208
        %s210 = sand.u32 %s82, 1
        %s211 = scalar_lea.sflag [#allocation4], %s210
        %s212 = sand.u32 %s82, 1
        %s213 = smul.addr %s212, 8
        %s214 = scalar_lea.vmem [#allocation7], %s213
        // Predicated region
        $region37: #{tpu_custom_call.1} parent=27 // pred_check
          %p215 = pneg %p92
        $region38: #{tpu_custom_call.1} parent=27 // pred_check_branch
          %217 = sbr.rel (%p215) target = $region40
        $region39: #{tpu_custom_call.1} parent=27 // pred_region
          %s219 = ssub.s32 128, 128
          %220 = vsyncadd %s211, %s219
          %s221 = smul.addr %s22, 128
          %s222 = scalar_lea.hbm %s2, %s221
          %s224 = sshll.u32 %s214, 4
          %s225 = int_to_ptr.vmem [resolvable:$true] %s224
          %227 = dma.vmem_to_hbm [thread:$0]  %s225, 128, %s222, %s211
        $region40: #{tpu_custom_call.1} parent=27 // pred_fallthru
          _
      $region28: #{tpu_custom_call.1} parent=5 // pred_fallthru
        _
      %p228 = scmp.le.s32.totalorder 2, %s17
      // Predicated region
      $region41: #{tpu_custom_call.1} parent=5 // pred_check
        %p229 = pneg %p228
      $region42: #{tpu_custom_call.1} parent=5 // pred_check_branch
        %231 = sbr.rel (%p229) target = $region44
      $region43: #{tpu_custom_call.1} parent=5 // pred_region
        %s232 = ssub.s32 %s17, 2
        // Predicated region
        $region45: #{tpu_custom_call.1} parent=43 // pred_check
          %p233 = pneg %p98
        $region46: #{tpu_custom_call.1} parent=43 // pred_check_branch
          %235 = sbr.rel (%p233) target = $region48
        $region47: #{tpu_custom_call.1} parent=43 // pred_region
          %s236 = sand.u32 %s83, 1
          %s237 = scalar_lea.sflag [#allocation4], %s236
          %s238 = sand.u32 %s83, 1
          %s239 = smul.addr %s238, 8
          %s240 = scalar_lea.vmem [#allocation7], %s239
          %241 = dma.done %s237, 128
        $region48: #{tpu_custom_call.1} parent=43 // pred_fallthru
          _
      $region44: #{tpu_custom_call.1} parent=5 // pred_fallthru
        _
    $region6: #{tpu_custom_call.1} parent=1 // loop_footer
      %s21 = sadd.s32 1, %s17
    $region7: #{tpu_custom_call.1} parent=1 // loop_footer_branch
      %16 = sbr.rel target = $region3
    $region8: #{tpu_custom_call.1} parent=1 // loop_exit
      _
    %242 = vsyncpa [#allocation3], 1
    %s243 = scalar_lea.sflag [#allocation3], 1
    %244 = vsyncpa %s243, 1
    %245 = vsyncpa [#allocation6], 1
    %s246 = scalar_lea.sflag [#allocation6], 1
    %247 = vsyncpa %s246, 1
    %248 = vsyncpa [#allocation4], 1
    %s249 = scalar_lea.sflag [#allocation4], 1
    %250 = vsyncpa %s249, 1

</llo_original>
